<compile_context>
chip_gen: v5e
topology: v5e:2x2
jax: 0.10.0
libtpu: 0.0.40
codegen_flags: <defaults>
</compile_context>

<pallas_src>
import jax
import jax.numpy as jnp
from jax.experimental import pallas as pl
from jax.experimental.pallas import tpu as pltpu

LRELU_SLOPE = 0.1
MAX_T_TILE = 512          # lane-dense time tile; multiple of 128, fits v7x VMEM at 512ch


def get_padding(kernel_size, dilation=1):
    return (kernel_size * dilation - dilation) // 2


# ----------------------------------------------------------------------------
# Fused conv1d Pallas kernel:
#   leaky_relu-in -> im2col -> single bf16 MXU matmul -> bias -> +res -> +res2 -> act
# ----------------------------------------------------------------------------
def _make_conv1d_kernel(K, dilation, t_tile, in_slope, out_act,
                        has_bias, has_res, has_res2):
    def kernel(*refs):
        i = 0
        x_ref = refs[i]; i += 1          # (1, Cin, t_tile)          f32
        xh_ref = refs[i]; i += 1         # (1, Cin, HALO_BLK)        f32 (right halo)
        w_ref = refs[i]; i += 1          # (Cout, K*Cin)             bf16
        b_ref = None
        if has_bias:
            b_ref = refs[i]; i += 1      # (Cout, 1)                 f32
        r_ref = None
        if has_res:
            r_ref = refs[i]; i += 1      # (1, Cout, t_tile)         f32
        r2_ref = None
        if has_res2:
            r2_ref = refs[i]; i += 1     # (1, Cout, t_tile)         f32
        o_ref = refs[i]                  # (1, Cout, t_tile)

        # current tile + right halo (lane-aligned concat)
        x = jnp.concatenate([x_ref[0], xh_ref[0]], axis=1)      # (Cin, t_tile + halo_blk)
        if in_slope is not None:
            x = jnp.where(x >= 0, x, in_slope * x)              # fused leaky_relu (f32)

        # im2col: K shifted windows stacked on the sublane axis -> one MXU matmul
        cols = [x[:, kk * dilation: kk * dilation + t_tile] for kk in range(K)]
        xcat = jnp.concatenate(cols, axis=0).astype(jnp.bfloat16)   # (K*Cin, t_tile)

        acc = jnp.dot(w_ref[...], xcat, preferred_element_type=jnp.float32)
        if has_bias:
            acc = acc + b_ref[...]                               # (Cout,1) broadcast
        if has_res:
            acc = acc + r_ref[0]
        if has_res2:
            acc = acc + r2_ref[0]
        if out_act == "tanh":
            acc = jnp.tanh(acc)
        o_ref[0] = acc.astype(o_ref.dtype)

    return kernel


def conv1d(x, w, b=None, *, dilation=1, padding=0, in_slope=None, out_act=None,
           res=None, res2=None):
    """x: (B, Cin, T), w: (Cout, Cin, K), b: (Cout,) | None, res/res2: (B, Cout, Tout)."""
    B, Cin, T = x.shape
    Cout, Cin_w, K = w.shape
    assert Cin_w == Cin
    halo = dilation * (K - 1)
    t_out = T + 2 * padding - halo
    assert t_out > 0

    # --- time tiling: lane-dense tiles, halo block from the same array ---
    halo_blk = max(128, ((halo + 127) // 128) * 128)
    cap = max(halo_blk, (MAX_T_TILE // halo_blk) * halo_blk)
    t_tile = min(((t_out + halo_blk - 1) // halo_blk) * halo_blk, cap)
    ratio = t_tile // halo_blk
    nT = -(-t_out // t_tile)
    t_out_pad = nT * t_tile
    L_in = t_out_pad + halo_blk

    xp = jnp.pad(x, ((0, 0), (0, 0), (padding, L_in - padding - T)))

    # (Cout, K*Cin), k-major / cin-minor to match the in-kernel im2col; bf16 operands.
    w2d = jnp.transpose(w, (0, 2, 1)).reshape(Cout, K * Cin).astype(jnp.bfloat16)

    has_bias = b is not None
    has_res = res is not None
    has_res2 = res2 is not None

    inputs = [xp, xp, w2d]
    in_specs = [
        pl.BlockSpec((1, Cin, t_tile), lambda bi, tj: (bi, 0, tj)),
        pl.BlockSpec((1, Cin, halo_blk), lambda bi, tj: (bi, 0, (tj + 1) * ratio)),
        pl.BlockSpec((Cout, K * Cin), lambda bi, tj: (0, 0)),
    ]
    if has_bias:
        inputs.append(b.reshape(Cout, 1).astype(jnp.float32))
        in_specs.append(pl.BlockSpec((Cout, 1), lambda bi, tj: (0, 0)))

    def _fit(r):  # pad a residual input up to the padded output length
        if r.shape[2] < t_out_pad:
            r = jnp.pad(r, ((0, 0), (0, 0), (0, t_out_pad - r.shape[2])))
        elif r.shape[2] > t_out_pad:
            r = r[:, :, :t_out_pad]
        return r

    if has_res:
        inputs.append(_fit(res))
        in_specs.append(pl.BlockSpec((1, Cout, t_tile), lambda bi, tj: (bi, 0, tj)))
    if has_res2:
        inputs.append(_fit(res2))
        in_specs.append(pl.BlockSpec((1, Cout, t_tile), lambda bi, tj: (bi, 0, tj)))

    kernel = _make_conv1d_kernel(K, dilation, t_tile, in_slope, out_act,
                                 has_bias, has_res, has_res2)

    y = pl.pallas_call(
        kernel,
        out_shape=jax.ShapeDtypeStruct((B, Cout, t_out_pad), jnp.float32),
        grid_spec=pltpu.PrefetchScalarGridSpec(
            num_scalar_prefetch=0,
            grid=(B, nT),
            in_specs=in_specs,
            out_specs=pl.BlockSpec((1, Cout, t_tile), lambda bi, tj: (bi, 0, tj)),
        ),
        compiler_params=pltpu.CompilerParams(
            dimension_semantics=("parallel", "parallel")),
    )(*inputs)

    if t_out_pad != t_out:
        y = y[:, :, :t_out]
    return y


def conv_transpose1d(x, w, b, *, stride, padding, in_slope=None, w_scale=1.0):
    """PyTorch ConvTranspose1d (w: (Cin, Cout, K)) via polyphase decomposition.

    One low-rate conv over x with stride*Cout stacked output channels (each
    output phase r uses taps w[:, :, r::stride], flipped / right-aligned), then
    an XLA interleave of the phases.  The fused leaky_relu on x matches the
    PyTorch forward (lrelu applied before the transposed conv).  `w_scale`
    folds a pending 1/num_kernels scale of the input into the weights.
    """
    B, Cin, T = x.shape
    Cin_w, Cout, K = w.shape
    assert Cin_w == Cin
    s = stride
    Kp = -(-K // s)                                   # taps per output phase

    def tap(r, kk):
        kidx = r + (Kp - 1 - kk) * s                  # flipped, right-aligned
        if 0 <= kidx < K:
            return jnp.transpose(w[:, :, kidx]) * w_scale   # (Cout, Cin)
        return jnp.zeros((Cout, Cin), w.dtype)

    w_st = jnp.stack([jnp.stack([tap(r, kk) for kk in range(Kp)], axis=-1)
                      for r in range(s)], axis=1)     # (Cout, s, Cin, Kp)
    w_st = w_st.reshape(Cout * s, Cin, Kp)            # stacked channel = o*s + r
    b_st = jnp.repeat(b, s)                           # bias per stacked channel

    y = conv1d(x, w_st, b_st, dilation=1, padding=Kp - 1, in_slope=in_slope)
    M = y.shape[2]                                    # = T + Kp - 1
    z = y.reshape(B, Cout, s, M).transpose(0, 1, 3, 2).reshape(B, Cout, M * s)
    T_out = (T - 1) * s - 2 * padding + K
    return z[:, :, padding: padding + T_out]


# ----------------------------------------------------------------------------
# ResBlock1 (modules.ResBlock1); `extra` is the running cross-resblock sum,
# fused into the final conv of the chain.
# ----------------------------------------------------------------------------
def resblock1(x, blocks, kernel_size, extra=None):
    n = len(blocks)
    for idx, ((w1, b1, d), (w2, b2)) in enumerate(blocks):
        xt = conv1d(x, w1, b1, dilation=d, padding=get_padding(kernel_size, d),
                    in_slope=LRELU_SLOPE)
        x = conv1d(xt, w2, b2, dilation=1, padding=get_padding(kernel_size, 1),
                   in_slope=LRELU_SLOPE, res=x,
                   res2=(extra if idx == n - 1 else None))
    return x


# ----------------------------------------------------------------------------
# Generator parameters (deterministic synthetic init) and forward
# ----------------------------------------------------------------------------
def init_generator_params(key, initial_channel, resblock_kernel_sizes,
                          resblock_dilation_sizes, upsample_rates,
                          upsample_initial_channel, upsample_kernel_sizes,
                          gin_channels):
    keys = iter(jax.random.split(key, 512))

    def nrm(shape, std):
        return std * jax.random.normal(next(keys), shape, jnp.float32)

    params = {}
    params["conv_pre_w"] = nrm((upsample_initial_channel, initial_channel, 7), 0.05)
    params["conv_pre_b"] = nrm((upsample_initial_channel,), 0.05)
    if gin_channels:
        params["cond_w"] = nrm((upsample_initial_channel, gin_channels, 1), 0.05)
        params["cond_b"] = nrm((upsample_initial_channel,), 0.05)

    ups = []
    for i, (u, k) in enumerate(zip(upsample_rates, upsample_kernel_sizes)):
        cin = upsample_initial_channel // 2 ** i
        cout = upsample_initial_channel // 2 ** (i + 1)
        # init_weights: normal(0, 0.01) on the ConvTranspose weights
        ups.append((nrm((cin, cout, k), 0.01), nrm((cout,), 0.01), u, (k - u) // 2))
    params["ups"] = ups

    resblocks = []
    for i in range(len(upsample_rates)):
        ch = upsample_initial_channel // 2 ** (i + 1)
        for k, ds in zip(resblock_kernel_sizes, resblock_dilation_sizes):
            blocks = []
            for d in ds:
                w1 = nrm((ch, ch, k), 0.05)
                b1 = nrm((ch,), 0.05)
                w2 = nrm((ch, ch, k), 0.05)
                b2 = nrm((ch,), 0.05)
                blocks.append(((w1, b1, d), (w2, b2)))
            resblocks.append((k, blocks))
    params["resblocks"] = resblocks

    ch = upsample_initial_channel // 2 ** len(upsample_rates)
    params["conv_post_w"] = nrm((1, ch, 7), 0.05)        # bias=False
    return params


def generator_forward(params, x, g=None, *, num_kernels, num_upsamples):
    # x = self.conv_pre(x)
    x = conv1d(x, params["conv_pre_w"], params["conv_pre_b"], padding=3)
    # if g is not None: x = x + self.cond(g)  -- 1x1 conv over a length-1 g: plain JAX
    if g is not None:
        cond = jnp.einsum('oc,bcs->bos', params["cond_w"][:, :, 0], g)
        x = x + cond + params["cond_b"][None, :, None]

    # pending 1/num_kernels scale from the previous stage's resblock average,
    # folded into the next linear layer's weights (lrelu is positively homogeneous).
    pending_scale = 1.0
    for i in range(num_upsamples):
        w_up, b_up, stride, pad = params["ups"][i]
        # x = leaky_relu(x, 0.1); x = self.ups[i](x)   (lrelu fused into the kernel)
        x = conv_transpose1d(x, w_up, b_up, stride=stride, padding=pad,
                             in_slope=LRELU_SLOPE, w_scale=pending_scale)
        xs = None
        for j in range(num_kernels):
            k, blocks = params["resblocks"][i * num_kernels + j]
            xs = resblock1(x, blocks, k, extra=xs)       # fused running sum
        x = xs                                           # un-normalized sum
        pending_scale = 1.0 / num_kernels

    # x = leaky_relu(x) [slope 0.01]; x = conv_post(x); x = tanh(x)   (all fused)
    w_post = params["conv_post_w"] * pending_scale       # fold 1/num_kernels
    w_post = jnp.pad(w_post, ((0, 7), (0, 0), (0, 0)))   # Cout 1 -> 8 (dense sublanes)
    y = conv1d(x, w_post, None, padding=3, in_slope=0.01, out_act="tanh")
    return y[:, :1, :]


if __name__ == "__main__":
    # Small synthetic Generator config
    B, T = 2, 16
    initial_channel = 8
    gin_channels = 4
    resblock_kernel_sizes = [3, 5]
    resblock_dilation_sizes = [[1, 3], [1, 3]]
    upsample_rates = [2, 2]
    upsample_initial_channel = 32
    upsample_kernel_sizes = [4, 4]
    num_kernels = len(resblock_kernel_sizes)
    num_upsamples = len(upsample_rates)

    key = jax.random.PRNGKey(0)
    kp, kx, kg = jax.random.split(key, 3)
    params = init_generator_params(
        kp, initial_channel, resblock_kernel_sizes, resblock_dilation_sizes,
        upsample_rates, upsample_initial_channel, upsample_kernel_sizes,
        gin_channels)

    x = jax.random.normal(kx, (B, initial_channel, T), jnp.float32)
    g = jax.random.normal(kg, (B, gin_channels, 1), jnp.float32)

    y = generator_forward(params, x, g,
                          num_kernels=num_kernels, num_upsamples=num_upsamples)
    y = jax.block_until_ready(y)

    expected_T = T
    for u in upsample_rates:
        expected_T *= u
    assert y.shape == (B, 1, expected_T), y.shape
    assert bool(jnp.all(jnp.isfinite(y)))
    print("KERNEL_OK")
</pallas_src>

<mosaic_0001>
module attributes {stable_mosaic.version = 11 : i64} {
  func.func @kernel(%arg0: i32, %arg1: i32, %arg2: memref<1x8x128xf32, #tpu.memory_space<vmem>>, %arg3: memref<1x8x128xf32, #tpu.memory_space<vmem>>, %arg4: memref<32x56xbf16, #tpu.memory_space<vmem>>, %arg5: memref<32x1xf32, #tpu.memory_space<vmem>>, %arg6: memref<1x32x128xf32, #tpu.memory_space<vmem>>) attributes {dimension_semantics = [#tpu.dimension_semantics<parallel>, #tpu.dimension_semantics<parallel>], iteration_bounds = array<i64: 2, 1>, scalar_prefetch = 0 : i64, scratch_operands = 0 : i64, tpu.core_type = #tpu.core_type<tc>, window_params = [{transform_indices = @transform_0, window_bounds = array<i64: 1, 8, 128>}, {transform_indices = @transform_1, window_bounds = array<i64: 1, 8, 128>}, {pipeline_mode = #tpu.pipeline_mode<synchronous>, transform_indices = @transform_2, window_bounds = array<i64: 32, 56>}, {pipeline_mode = #tpu.pipeline_mode<synchronous>, transform_indices = @transform_3, window_bounds = array<i64: 32, 1>}, {transform_indices = @transform_4, window_bounds = array<i64: 1, 32, 128>}]} {
    %c0 = arith.constant 0 : index
    %c0_0 = arith.constant 0 : index
    %c0_1 = arith.constant 0 : index
    %0 = vector.load %arg2[%c0, %c0_0, %c0_1] : memref<1x8x128xf32, #tpu.memory_space<vmem>>, vector<1x8x128xf32>
    %1 = vector.shape_cast %0 : vector<1x8x128xf32> to vector<8x128xf32>
    %c0_2 = arith.constant 0 : index
    %c0_3 = arith.constant 0 : index
    %c0_4 = arith.constant 0 : index
    %2 = vector.load %arg3[%c0_2, %c0_3, %c0_4] : memref<1x8x128xf32, #tpu.memory_space<vmem>>, vector<1x8x128xf32>
    %3 = vector.shape_cast %2 : vector<1x8x128xf32> to vector<8x128xf32>
    %4 = tpu.concatenate %1, %3 in 1 : vector<8x128xf32>, vector<8x128xf32> -> vector<8x256xf32>
    %5 = vector.extract_strided_slice %4 {offsets = [0, 0], sizes = [8, 128], strides = [1, 1]} : vector<8x256xf32> to vector<8x128xf32>
    %6 = vector.extract_strided_slice %4 {offsets = [0, 1], sizes = [8, 128], strides = [1, 1]} : vector<8x256xf32> to vector<8x128xf32>
    %7 = vector.extract_strided_slice %4 {offsets = [0, 2], sizes = [8, 128], strides = [1, 1]} : vector<8x256xf32> to vector<8x128xf32>
    %8 = vector.extract_strided_slice %4 {offsets = [0, 3], sizes = [8, 128], strides = [1, 1]} : vector<8x256xf32> to vector<8x128xf32>
    %9 = vector.extract_strided_slice %4 {offsets = [0, 4], sizes = [8, 128], strides = [1, 1]} : vector<8x256xf32> to vector<8x128xf32>
    %10 = vector.extract_strided_slice %4 {offsets = [0, 5], sizes = [8, 128], strides = [1, 1]} : vector<8x256xf32> to vector<8x128xf32>
    %11 = vector.extract_strided_slice %4 {offsets = [0, 6], sizes = [8, 128], strides = [1, 1]} : vector<8x256xf32> to vector<8x128xf32>
    %12 = tpu.concatenate %5, %6, %7, %8, %9, %10, %11 in 0 : vector<8x128xf32>, vector<8x128xf32>, vector<8x128xf32>, vector<8x128xf32>, vector<8x128xf32>, vector<8x128xf32>, vector<8x128xf32> -> vector<56x128xf32>
    %13 = arith.truncf %12 : vector<56x128xf32> to vector<56x128xbf16>
    %c0_5 = arith.constant 0 : index
    %c0_6 = arith.constant 0 : index
    %14 = vector.load %arg4[%c0_5, %c0_6] : memref<32x56xbf16, #tpu.memory_space<vmem>>, vector<32x56xbf16>
    %cst = arith.constant dense<0.000000e+00> : vector<32x128xf32>
    %15 = tpu.matmul %14, %13, %cst {dimension_numbers = #tpu.dot_dimension_numbers<[1], [0], [0], [1], [0, 0, 1, 1], [], []>} : vector<32x56xbf16>, vector<56x128xbf16>, vector<32x128xf32> -> vector<32x128xf32>
    %c0_7 = arith.constant 0 : index
    %c0_8 = arith.constant 0 : index
    %16 = vector.load %arg5[%c0_7, %c0_8] : memref<32x1xf32, #tpu.memory_space<vmem>>, vector<32x1xf32>
    %17 = vector.broadcast %16 : vector<32x1xf32> to vector<32x128xf32>
    %18 = arith.addf %15, %17 : vector<32x128xf32>
    %c0_9 = arith.constant 0 : index
    %c0_10 = arith.constant 0 : index
    %c0_11 = arith.constant 0 : index
    %19 = vector.load %arg6[%c0_9, %c0_10, %c0_11] : memref<1x32x128xf32, #tpu.memory_space<vmem>>, vector<1x32x128xf32>
    %20 = vector.shape_cast %19 : vector<1x32x128xf32> to vector<32x128xf32>
    %21 = vector.shape_cast %18 : vector<32x128xf32> to vector<1x32x128xf32>
    tpu.vector_store %arg6[%c0_9, %c0_10, %c0_11], %21 {strides = array<i32>} : memref<1x32x128xf32, #tpu.memory_space<vmem>>, vector<1x32x128xf32>,
    return
  }
  func.func @transform_0(%arg0: i32, %arg1: i32) -> (i32, i32, i32) {
    %c0_i32 = arith.constant 0 : i32
    %c0_i32_0 = arith.constant 0 : i32
    return %arg0, %c0_i32, %arg1 : i32, i32, i32
  }
  func.func @transform_1(%arg0: i32, %arg1: i32) -> (i32, i32, i32) {
    %c1_i32 = arith.constant 1 : i32
    %0 = arith.addi %arg1, %c1_i32 : i32
    %c1_i32_0 = arith.constant 1 : i32
    %1 = arith.muli %0, %c1_i32_0 : i32
    %c0_i32 = arith.constant 0 : i32
    %c0_i32_1 = arith.constant 0 : i32
    return %arg0, %c0_i32, %1 : i32, i32, i32
  }
  func.func @transform_2(%arg0: i32, %arg1: i32) -> (i32, i32) {
    %c0_i32 = arith.constant 0 : i32
    %c0_i32_0 = arith.constant 0 : i32
    %c0_i32_1 = arith.constant 0 : i32
    return %c0_i32, %c0_i32_0 : i32, i32
  }
  func.func @transform_3(%arg0: i32, %arg1: i32) -> (i32, i32) {
    %c0_i32 = arith.constant 0 : i32
    %c0_i32_0 = arith.constant 0 : i32
    %c0_i32_1 = arith.constant 0 : i32
    return %c0_i32, %c0_i32_0 : i32, i32
  }
  func.func @transform_4(%arg0: i32, %arg1: i32) -> (i32, i32, i32) {
    %c0_i32 = arith.constant 0 : i32
    %c0_i32_0 = arith.constant 0 : i32
    return %arg0, %c0_i32, %arg1 : i32, i32, i32
  }
}

</mosaic_0001>

<llo_original>
// kernel: tpu_custom_call.1
$region0: #{tpu_custom_call.1}
  #allocation0 [shape = 'u32[]', space=smem, size = 0x4, offset = 0x4, fixed_abs, tag = 'smem constant byte address 0x4 - core index']
  #allocation1 [shape = 'u32[72,128]{1,0:T(1,128)}', space=vmem, size = 0x9000, scoped, tag = 'internal scratch']
  %s0 = inlined_call_operand.vmem [shape: f32[2,8,256], index: 0, kind: input, shape index: {}]
  %s1 = inlined_call_operand.hbm [shape: f32[2,8,256], index: 1, kind: input, shape index: {}]
  %s2 = inlined_call_operand.hbm [shape: bf16[32,56], index: 2, kind: input, shape index: {}]
  %s3 = inlined_call_operand.vmem [shape: f32[32,1], index: 3, kind: input, shape index: {}]
  %s4 = inlined_call_operand.hbm [shape: f32[2,32,128], index: 4, kind: output, shape index: {}]
  %s5 = sld [smem:[#allocation0]]
  $region57: #{tpu_custom_call.1} parent=0
    _
  %s7 = ssub.s32 1, %s5
  %s8 = scalar_select 0, %s7, %s5
  $region1: #{tpu_custom_call.1} parent=0
    #allocation2 [shape = 'u8[8192]{0}', space=vmem, size = 0x2000, scoped, tag = 'input window, operand 1']
    #allocation3 [shape = 's32[2]{0}', space=sflag, size = 0x8, scoped, tag = 'scoped memory for tpu_custom_call.1']
    #allocation4 [shape = 's32[2]{0}', space=sflag, size = 0x8, scoped, tag = 'scoped memory for tpu_custom_call.1']
    #allocation5 [shape = 'u8[8192]{0}', space=vmem, size = 0x2000, scoped, tag = 'input window, operand 2, single buffered']
    #allocation6 [shape = 's32[1]{0}', space=sflag, size = 0x4, scoped, tag = 'scoped memory for tpu_custom_call.1']
    #allocation7 [shape = 'u8[32768]{0}', space=vmem, size = 0x8000, scoped, tag = 'output window, operand 0']
    %9 = vsyncpa [#allocation3], 0
    %s10 = scalar_lea.sflag [#allocation3], 1
    %11 = vsyncpa %s10, 0
    %12 = vsyncpa [#allocation6], 0
    %13 = vsyncpa [#allocation4], 0
    %s14 = scalar_lea.sflag [#allocation4], 1
    %15 = vsyncpa %s14, 0
    loop: start=0, step=1, limit=4
    $region2: #{tpu_custom_call.1} parent=1 // loop_pre_header
      _
    $region3: #{tpu_custom_call.1} parent=1 // loop_header
      %s17 = sphi 0, %s21
      %p18 = scmp.ge.s32.totalorder %s17, 4
      %s24 = sphi 0, %s36
      %s25 = sphi 0, %s32
      %s26 = sphi 0, %s24
      %s27 = sphi 0, %s25
      %s28 = sphi 0, %s26
      %s29 = sphi 0, %s27
      %s41 = sphi 0, %s43
      %s44 = sphi 0, %s41
      %s45 = sphi 0, %s44
      %s61 = sphi 0, %s45
      %s71 = sphi 0, %s73
      %s74 = sphi 0, %s71
      %s75 = sphi 0, %s74
      %s91 = sphi 0, %s75
      %s95 = sphi 0, %s95
      %s97 = sphi 0, %s95
      %s98 = sphi 0, %s97
      %s112 = sphi 0, %s98
      %s116 = sphi 0, %s116
      %s118 = sphi 0, %s116
      %s119 = sphi 0, %s118
      %s133 = sphi 0, %s119
      %s141 = sphi 0, %s143
      %s144 = sphi 0, %s141
      %s145 = sphi 0, %s144
      %s161 = sphi 0, %s145
    $region4: #{tpu_custom_call.1} parent=1 // loop_header_branch
      %20 = sbr.rel (%p18) target = $region8
    $region5: #{tpu_custom_call.1} parent=1 // loop_body
      %s22 = ssub.s32 %s17, 1
      %s23 = ssub.s32 %s17, 2
      %s30 = sadd.s32 1, %s25
      %p31 = scmp.ge.s32.totalorder %s30, 1
      %s32 = scalar_select %p31, 0, %s30
      %s33 = sadd.s32 1, %s24
      %s34 = scalar_select %p31, %s33, %s24
      %p35 = scmp.ge.s32.totalorder %s34, 2
      %s36 = scalar_select %p35, 0, %s34
      %s37 = ssub.s32 %s24, %s36
      %s38 = ssub.s32 %s25, %s32
      %s39 = sor.u32 %s37, %s38
      %p40 = scmp.eq.s32.totalorder %s39, 0
      %s42 = sadd.s32 %s41, 1
      %s43 = scalar_select %p40, %s41, %s42
      %p46 = pneg %p40
      %p47 = scmp.eq.s32.totalorder %s17, 1
      %p48 = por %p46, %p47
      %p49 = scmp.ne.s32.totalorder %s41, %s44
      %p50 = scmp.eq.s32.totalorder %s17, 0
      %p51 = por %p49, %p50
      %p52 = scmp.ne.s32.totalorder %s41, %s44
      %p53 = scmp.eq.s32.totalorder %s22, 1
      %p54 = por %p52, %p53
      %p55 = scmp.ne.s32.totalorder %s44, %s45
      %p56 = scmp.eq.s32.totalorder %s22, 0
      %p57 = por %p55, %p56
      %p58 = scmp.ne.s32.totalorder %s44, %s45
      %p59 = scmp.eq.s32.totalorder %s23, 1
      %p60 = por %p58, %p59
      %p62 = scmp.ne.s32.totalorder %s45, %s61
      %p63 = scmp.eq.s32.totalorder %s23, 0
      %p64 = por %p62, %p63
      %s65 = sadd.s32 %s25, 1
      %s66 = sadd.s32 %s32, 1
      %s67 = ssub.s32 %s24, %s36
      %s68 = ssub.s32 %s65, %s66
      %s69 = sor.u32 %s67, %s68
      %p70 = scmp.eq.s32.totalorder %s69, 0
      %s72 = sadd.s32 %s71, 1
      %s73 = scalar_select %p70, %s71, %s72
      %p76 = pneg %p70
      %p77 = scmp.eq.s32.totalorder %s17, 1
      %p78 = por %p76, %p77
      %p79 = scmp.ne.s32.totalorder %s71, %s74
      %p80 = scmp.eq.s32.totalorder %s17, 0
      %p81 = por %p79, %p80
      %p82 = scmp.ne.s32.totalorder %s71, %s74
      %p83 = scmp.eq.s32.totalorder %s22, 1
      %p84 = por %p82, %p83
      %p85 = scmp.ne.s32.totalorder %s74, %s75
      %p86 = scmp.eq.s32.totalorder %s22, 0
      %p87 = por %p85, %p86
      %p88 = scmp.ne.s32.totalorder %s74, %s75
      %p89 = scmp.eq.s32.totalorder %s23, 1
      %p90 = por %p88, %p89
      %p92 = scmp.ne.s32.totalorder %s75, %s91
      %p93 = scmp.eq.s32.totalorder %s23, 0
      %p94 = por %p92, %p93
      %s96 = sadd.s32 %s95, 1
      %p99 = scmp.eq.s32.totalorder %s17, 1
      %p100 = scmp.ne.s32.totalorder %s95, %s97
      %p101 = scmp.eq.s32.totalorder %s17, 0
      %p102 = por %p100, %p101
      %p103 = scmp.ne.s32.totalorder %s95, %s97
      %p104 = scmp.eq.s32.totalorder %s22, 1
      %p105 = por %p103, %p104
      %p106 = scmp.ne.s32.totalorder %s97, %s98
      %p107 = scmp.eq.s32.totalorder %s22, 0
      %p108 = por %p106, %p107
      %p109 = scmp.ne.s32.totalorder %s97, %s98
      %p110 = scmp.eq.s32.totalorder %s23, 1
      %p111 = por %p109, %p110
      %p113 = scmp.ne.s32.totalorder %s98, %s112
      %p114 = scmp.eq.s32.totalorder %s23, 0
      %p115 = por %p113, %p114
      %s117 = sadd.s32 %s116, 1
      %p120 = scmp.eq.s32.totalorder %s17, 1
      %p121 = scmp.ne.s32.totalorder %s116, %s118
      %p122 = scmp.eq.s32.totalorder %s17, 0
      %p123 = por %p121, %p122
      %p124 = scmp.ne.s32.totalorder %s116, %s118
      %p125 = scmp.eq.s32.totalorder %s22, 1
      %p126 = por %p124, %p125
      %p127 = scmp.ne.s32.totalorder %s118, %s119
      %p128 = scmp.eq.s32.totalorder %s22, 0
      %p129 = por %p127, %p128
      %p130 = scmp.ne.s32.totalorder %s118, %s119
      %p131 = scmp.eq.s32.totalorder %s23, 1
      %p132 = por %p130, %p131
      %p134 = scmp.ne.s32.totalorder %s119, %s133
      %p135 = scmp.eq.s32.totalorder %s23, 0
      %p136 = por %p134, %p135
      %s137 = ssub.s32 %s24, %s36
      %s138 = ssub.s32 %s25, %s32
      %s139 = sor.u32 %s137, %s138
      %p140 = scmp.eq.s32.totalorder %s139, 0
      %s142 = sadd.s32 %s141, 1
      %s143 = scalar_select %p140, %s141, %s142
      %p146 = pneg %p140
      %p147 = scmp.eq.s32.totalorder %s17, 1
      %p148 = por %p146, %p147
      %p149 = scmp.ne.s32.totalorder %s141, %s144
      %p150 = scmp.eq.s32.totalorder %s17, 0
      %p151 = por %p149, %p150
      %p152 = scmp.ne.s32.totalorder %s141, %s144
      %p153 = scmp.eq.s32.totalorder %s22, 1
      %p154 = por %p152, %p153
      %p155 = scmp.ne.s32.totalorder %s144, %s145
      %p156 = scmp.eq.s32.totalorder %s22, 0
      %p157 = por %p155, %p156
      %p158 = scmp.ne.s32.totalorder %s144, %s145
      %p159 = scmp.eq.s32.totalorder %s23, 1
      %p160 = por %p158, %p159
      %p162 = scmp.ne.s32.totalorder %s145, %s161
      %p163 = scmp.eq.s32.totalorder %s23, 0
      %p164 = por %p162, %p163
      %p165 = scmp.le.s32.totalorder 1, %s17
      %p166 = scmp.lt.s32.totalorder %s17, 3
      %p167 = pnand %p165, %p166
      %p168 = pneg %p167
      // Predicated region
      $region9: #{tpu_custom_call.1} parent=5 // pred_check
        _
      $region10: #{tpu_custom_call.1} parent=5 // pred_check_branch
        %170 = sbr.rel (%p167) target = $region12
      $region11: #{tpu_custom_call.1} parent=5 // pred_region
        %s171 = ssub.s32 %s17, 1
        // Predicated region
        $region13: #{tpu_custom_call.1} parent=11 // pred_check
          %p172 = pneg %p108
        $region14: #{tpu_custom_call.1} parent=11 // pred_check_branch
          %174 = sbr.rel (%p172) target = $region16
        $region15: #{tpu_custom_call.1} parent=11 // pred_region
          %176 = vsyncadd [#allocation6], 0
          %s177 = sshll.u32 %s2, 4
          %s178 = int_to_ptr.hbm [resolvable:$true] %s177
          %s179 = sshll.u32 [#allocation5], 4
          %s180 = int_to_ptr.vmem [resolvable:$true] %s179
          %185 = dma.hbm_to_vmem [thread:$0]  %s178, 256, %s180, [#allocation6], 64, 64, 4
        $region16: #{tpu_custom_call.1} parent=11 // pred_fallthru
          _
        // Predicated region
        $region17: #{tpu_custom_call.1} parent=11 // pred_check
          %p186 = pneg %p129
        $region18: #{tpu_custom_call.1} parent=11 // pred_check_branch
          %188 = sbr.rel (%p186) target = $region20
        $region19: #{tpu_custom_call.1} parent=11 // pred_region
          _
        $region20: #{tpu_custom_call.1} parent=11 // pred_fallthru
          _
      $region12: #{tpu_custom_call.1} parent=5 // pred_fallthru
        _
      %p189 = scmp.lt.s32.totalorder %s17, 2
      // Predicated region
      $region21: #{tpu_custom_call.1} parent=5 // pred_check
        %p190 = pneg %p189
      $region22: #{tpu_custom_call.1} parent=5 // pred_check_branch
        %192 = sbr.rel (%p190) target = $region24
      $region23: #{tpu_custom_call.1} parent=5 // pred_region
        // Predicated region
        $region25: #{tpu_custom_call.1} parent=23 // pred_check
          %p193 = pneg %p51
        $region26: #{tpu_custom_call.1} parent=23 // pred_check_branch
          %195 = sbr.rel (%p193) target = $region28
        $region27: #{tpu_custom_call.1} parent=23 // pred_region
          %p196 = scmp.lt.s32.totalorder %s24, 1
          %s197 = scalar_select %p196, %s24, 1
          %p198 = scmp.lt.s32.totalorder %s25, 1
          %s199 = scalar_select %p198, %s25, 1
          %s200 = smul.addr %s197, 2
          %s201 = sadd.s32 %s199, %s200
          %s202 = smul.addr %s201, 8
          %s203 = scalar_lea.vmem %s0, %s202
        $region28: #{tpu_custom_call.1} parent=23 // pred_fallthru
          _
        // Predicated region
        $region29: #{tpu_custom_call.1} parent=23 // pred_check
          %p204 = pneg %p81
        $region30: #{tpu_custom_call.1} parent=23 // pred_check_branch
          %206 = sbr.rel (%p204) target = $region32
        $region31: #{tpu_custom_call.1} parent=23 // pred_region
          %s207 = sand.u32 %s71, 1
          %s208 = scalar_lea.sflag [#allocation3], %s207
          %s209 = sand.u32 %s71, 1
          %s210 = smul.addr %s209, 8
          %s211 = scalar_lea.vmem [#allocation2], %s210
          %s212 = sadd.s32 %s25, 1
          %214 = vsyncadd %s208, 0
          %s215 = smul.addr %s24, 2
          %s216 = sadd.s32 %s212, %s215
          %s217 = smul.addr %s216, 8
          %s218 = scalar_lea.hbm %s1, %s217
          %s220 = sshll.u32 %s218, 4
          %s221 = int_to_ptr.hbm [resolvable:$true] %s220
          %s222 = sshll.u32 %s211, 4
          %s223 = int_to_ptr.vmem [resolvable:$true] %s222
          %225 = dma.hbm_to_vmem [thread:$0]  %s221, 128, %s223, %s208
        $region32: #{tpu_custom_call.1} parent=23 // pred_fallthru
          _
      $region24: #{tpu_custom_call.1} parent=5 // pred_fallthru
        _
      %p226 = scmp.le.s32.totalorder 1, %s17
      %p227 = scmp.lt.s32.totalorder %s17, 3
      %p228 = pnand %p226, %p227
      %p229 = pneg %p228
      // Predicated region
      $region33: #{tpu_custom_call.1} parent=5 // pred_check
        _
      $region34: #{tpu_custom_call.1} parent=5 // pred_check_branch
        %231 = sbr.rel (%p228) target = $region36
      $region35: #{tpu_custom_call.1} parent=5 // pred_region
        %s232 = ssub.s32 %s17, 1
        %s233 = sand.u32 %s74, 1
        %s234 = scalar_lea.sflag [#allocation3], %s233
        %s235 = sand.u32 %s74, 1
        %s236 = smul.addr %s235, 8
        %s237 = scalar_lea.vmem [#allocation2], %s236
        // Predicated region
        $region37: #{tpu_custom_call.1} parent=35 // pred_check
          %p238 = pneg %p87
        $region38: #{tpu_custom_call.1} parent=35 // pred_check_branch
          %240 = sbr.rel (%p238) target = $region40
        $region39: #{tpu_custom_call.1} parent=35 // pred_region
          %242 = dma.done %s234, 128
        $region40: #{tpu_custom_call.1} parent=35 // pred_fallthru
          _
        // Predicated region
        $region41: #{tpu_custom_call.1} parent=35 // pred_check
          %p243 = pneg %p108
        $region42: #{tpu_custom_call.1} parent=35 // pred_check_branch
          %245 = sbr.rel (%p243) target = $region44
        $region43: #{tpu_custom_call.1} parent=35 // pred_region
          %247 = dma.done [#allocation6], 256
        $region44: #{tpu_custom_call.1} parent=35 // pred_fallthru
          _
        %p248 = scmp.lt.s32.totalorder %s26, 1
        %s249 = scalar_select %p248, %s26, 1
        %p250 = scmp.lt.s32.totalorder %s27, 1
        %s251 = scalar_select %p250, %s27, 1
        %s252 = smul.addr %s249, 2
        %s253 = sadd.s32 %s251, %s252
        %s254 = smul.addr %s253, 8
        %s255 = scalar_lea.vmem %s0, %s254
        %p256 = pneg %p57
        %p257 = pneg %p54
        %s258 = sand.u32 %s74, 1
        %s259 = scalar_lea.sflag [#allocation3], %s258
        %s260 = sand.u32 %s74, 1
        %s261 = smul.addr %s260, 8
        %s262 = scalar_lea.vmem [#allocation2], %s261
        %p263 = pneg %p87
        %p264 = pneg %p84
        %p265 = pneg %p108
        %p266 = pneg %p105
        %p267 = pneg %p129
        %p268 = pneg %p126
        %p269 = pneg %p157
        %p270 = pneg %p154
        %s271 = sand.u32 %s144, 1
        %s272 = scalar_lea.sflag [#allocation4], %s271
        %s273 = sand.u32 %s144, 1
        %s274 = smul.addr %s273, 32
        %s275 = scalar_lea.vmem [#allocation7], %s274
        %p276 = scmp.lt.s32.totalorder %s26, 1
        %s277 = scalar_select %p276, %s26, 1
        %p278 = scmp.lt.s32.totalorder %s27, 1
        %s279 = scalar_select %p278, %s27, 1
        %s280 = smul.addr %s277, 2
        %s281 = sadd.s32 %s279, %s280
        %s282 = smul.addr %s281, 8
        %s283 = scalar_lea.vmem %s0, %s282
        %s284 = sadd.s32 %s27, 1
        %v286 = vld [vmem:[%s283] sm:$0xff]
        %v287 = vld [vmem:[%s237] sm:$0xff]
        %290 = vrot.lane.b32.xlu0 %v286, 127
        %v291 = vpop.permute.xlu0 %290
        %292 = vrot.lane.b32.xlu0 %v287, 127
        %v293 = vpop.permute.xlu0 %292
        %vm294 = vcmask 1039360
        %v295 = vsel %vm294, %v291, %v293
        %297 = vrot.lane.b32.xlu0 %v286, 126
        %v298 = vpop.permute.xlu0 %297
        %299 = vrot.lane.b32.xlu0 %v287, 126
        %v300 = vpop.permute.xlu0 %299
        %vm301 = vcmask 1031168
        %v302 = vsel %vm301, %v298, %v300
        %304 = vrot.lane.b32.xlu0 %v286, 125
        %v305 = vpop.permute.xlu0 %304
        %306 = vrot.lane.b32.xlu0 %v287, 125
        %v307 = vpop.permute.xlu0 %306
        %vm308 = vcmask 1022976
        %v309 = vsel %vm308, %v305, %v307
        %311 = vrot.lane.b32.xlu0 %v286, 124
        %v312 = vpop.permute.xlu0 %311
        %313 = vrot.lane.b32.xlu0 %v287, 124
        %v314 = vpop.permute.xlu0 %313
        %vm315 = vcmask 1014784
        %v316 = vsel %vm315, %v312, %v314
        %318 = vrot.lane.b32.xlu0 %v286, 123
        %v319 = vpop.permute.xlu0 %318
        %320 = vrot.lane.b32.xlu0 %v287, 123
        %v321 = vpop.permute.xlu0 %320
        %vm322 = vcmask 1006592
        %v323 = vsel %vm322, %v319, %v321
        %325 = vrot.lane.b32.xlu0 %v286, 122
        %v326 = vpop.permute.xlu0 %325
        %327 = vrot.lane.b32.xlu0 %v287, 122
        %v328 = vpop.permute.xlu0 %327
        %vm329 = vcmask 998400
        %v330 = vsel %vm329, %v326, %v328
        %v332 = vpack.c.bf16 %v295, %v286
        %v333 = vpack.c.bf16 %v309, %v302
        %v334 = vpack.c.bf16 %v323, %v316
        %v335 = vpack.c.bf16 %v330, %v330
        %v336 = vld [vmem:[#allocation5] sm:$0xf]
        %v337 = vld [vmem:[#allocation5 + $0x4] sm:$0xf]
        %v338 = vld [vmem:[#allocation5 + $0x8] sm:$0xf]
        %v339 = vld [vmem:[#allocation5 + $0xc] sm:$0xf]
        %v340 = vld [vmem:[%s3] sm:$0xff]
        %v341 = vld [vmem:[%s3 + $0x8] sm:$0xff]
        %v342 = vld [vmem:[%s3 + $0x10] sm:$0xff]
        %v343 = vld [vmem:[%s3 + $0x18] sm:$0xff]
        %345 = vset.pattern.permute.xlu0 0
        %346 = vperm.xlu0 %345, %v340
        %v347 = vpop.permute.xlu0 %346
        %350 = vset.pattern.permute.xlu0 0
        %351 = vperm.xlu0 %350, %v341
        %v352 = vpop.permute.xlu0 %351
        %355 = vset.pattern.permute.xlu0 0
        %356 = vperm.xlu0 %355, %v342
        %v357 = vpop.permute.xlu0 %356
        %360 = vset.pattern.permute.xlu0 0
        %361 = vperm.xlu0 %360, %v343
        %v362 = vpop.permute.xlu0 %361
        %v368 = vunpack.c.l.b16 %v336
        %v369 = vunpack.c.l.b16 %v337
        %v370 = vunpack.c.l.b16 %v338
        %v371 = vunpack.c.l.b16 %v339
        %v372 = vpack.c.b16 %v369, %v368
        %v373 = vpack.c.b16 %v371, %v370
        %vm374 = vcmask 457728
        %v376 = vsel %vm374, %v372, 0
        %v379 = vsel %vm374, %v373, 0
        %vm381 = vcmask 1043456
        %v383 = vsel %vm381, %v335, 0
        %385 = vmatpush.bf16.msra.mxu0 0
        %386 = vmatpush.bf16.msra.mxu0 0
        %387 = vmatpush.bf16.msra.mxu0 0
        %388 = vmatpush.bf16.msra.mxu0 0
        %389 = vmatpush.bf16.msra.mxu0 %v383
        %390 = vmatpush.bf16.msra.mxu0 %v334
        %391 = vmatpush.bf16.msra.mxu0 %v333
        %392 = vmatpush.bf16.msra.mxu0 %v332
        %393 = vmatmul.bf16.gmra.mxu0 %v376
        %v394 = vpop.f32.mrf.mxu0
        %v395 = vadd.f32 %v347, %v394
        %v396 = vpop.f32.mrf.mxu0
        %v397 = vadd.f32 %v352, %v396
        %398 = vmatmul.bf16.gmra.mxu0 %v379
        %v399 = vpop.f32.mrf.mxu0
        %v400 = vadd.f32 %v357, %v399
        %v401 = vpop.f32.mrf.mxu0
        %v402 = vadd.f32 %v362, %v401
        %403 = vdwg.mxu0
        %404 = vst [vmem:[%s275] sm:$0xff] %v395
        %405 = vst [vmem:[%s275 + $0x8] sm:$0xff] %v397
        %406 = vst [vmem:[%s275 + $0x10] sm:$0xff] %v400
        %407 = vst [vmem:[%s275 + $0x18] sm:$0xff] %v402
        %s408 = sand.u32 %s144, 1
        %s409 = scalar_lea.sflag [#allocation4], %s408
        %s410 = sand.u32 %s144, 1
        %s411 = smul.addr %s410, 32
        %s412 = scalar_lea.vmem [#allocation7], %s411
        // Predicated region
        $region45: #{tpu_custom_call.1} parent=35 // pred_check
          %p413 = pneg %p154
        $region46: #{tpu_custom_call.1} parent=35 // pred_check_branch
          %415 = sbr.rel (%p413) target = $region48
        $region47: #{tpu_custom_call.1} parent=35 // pred_region
          %417 = vsyncadd %s409, 0
          %s418 = smul.addr %s26, 4
          %s419 = sadd.s32 %s27, %s418
          %s420 = smul.addr %s419, 8
          %s421 = scalar_lea.hbm %s4, %s420
          %s422 = sshll.u32 %s412, 4
          %s423 = int_to_ptr.vmem [resolvable:$true] %s422
          %s424 = sshll.u32 %s421, 4
          %s425 = int_to_ptr.hbm [resolvable:$true] %s424
          %430 = dma.vmem_to_hbm [thread:$0]  %s423, 512, %s425, %s409, 128, 128, 8
        $region48: #{tpu_custom_call.1} parent=35 // pred_fallthru
          _
      $region36: #{tpu_custom_call.1} parent=5 // pred_fallthru
        _
      %p431 = scmp.le.s32.totalorder 2, %s17
      // Predicated region
      $region49: #{tpu_custom_call.1} parent=5 // pred_check
        %p432 = pneg %p431
      $region50: #{tpu_custom_call.1} parent=5 // pred_check_branch
        %434 = sbr.rel (%p432) target = $region52
      $region51: #{tpu_custom_call.1} parent=5 // pred_region
        %s435 = ssub.s32 %s17, 2
        // Predicated region
        $region53: #{tpu_custom_call.1} parent=51 // pred_check
          %p436 = pneg %p160
        $region54: #{tpu_custom_call.1} parent=51 // pred_check_branch
          %438 = sbr.rel (%p436) target = $region56
        $region55: #{tpu_custom_call.1} parent=51 // pred_region
          %s439 = sand.u32 %s145, 1
          %s440 = scalar_lea.sflag [#allocation4], %s439
          %s441 = sand.u32 %s145, 1
          %s442 = smul.addr %s441, 32
          %s443 = scalar_lea.vmem [#allocation7], %s442
          %445 = dma.done %s440, 512
        $region56: #{tpu_custom_call.1} parent=51 // pred_fallthru
          _
      $region52: #{tpu_custom_call.1} parent=5 // pred_fallthru
        _
    $region6: #{tpu_custom_call.1} parent=1 // loop_footer
      %s21 = sadd.s32 1, %s17
    $region7: #{tpu_custom_call.1} parent=1 // loop_footer_branch
      %16 = sbr.rel target = $region3
    $region8: #{tpu_custom_call.1} parent=1 // loop_exit
      _
    %446 = vsyncpa [#allocation3], 1
    %s447 = scalar_lea.sflag [#allocation3], 1
    %448 = vsyncpa %s447, 1
    %449 = vsyncpa [#allocation6], 1
    %450 = vsyncpa [#allocation4], 1
    %s451 = scalar_lea.sflag [#allocation4], 1
    %452 = vsyncpa %s451, 1

</llo_original>
